<compile_context>
chip_gen: v7x
topology: tpu7x:2x2x1
jax: 0.10.0
libtpu: 0.0.40
codegen_flags: <defaults>
</compile_context>

<pallas_src>
import jax
import jax.numpy as jnp
from jax.experimental import pallas as pl
from jax.experimental.pallas import tpu as pltpu


def _round_up(a: int, b: int) -> int:
    return (a + b - 1) // b * b


def mlp2_kernel(x_ref, w1_ref, b1_ref, w23_ref, b3_ref, o_ref):
    # x:   (TM, D_in)    input dtype (cast to bf16 here; no wrapper cast pass)
    # w1:  (D_in, H1p)   bf16      b1: (1, H1p)  f32
    # w23: (H1p, C)      bf16      b3: (1, C)    f32
    # o:   (TM, C)       f32
    x = x_ref[...].astype(jnp.bfloat16)

    # first = nn.Linear(input_size, hidden_size_1)  + ReLU  (f32 accumulate)
    h1 = jnp.dot(x, w1_ref[...], preferred_element_type=jnp.float32) + b1_ref[...]
    h1 = jnp.maximum(h1, 0.0)

    # fc2 @ pred_layer folded into one matmul: (h1 @ w2) @ w3 == h1 @ (w2 @ w3)
    out = jnp.dot(h1.astype(jnp.bfloat16), w23_ref[...],
                  preferred_element_type=jnp.float32) + b3_ref[...]
    o_ref[...] = out.astype(o_ref.dtype)


def prepare_mlp2_params(w1, b1, w2, w3, b3):
    """One-time weight preprocessing (fold, pad, cast) hoisted out of forward."""
    input_size, h1 = w1.shape
    num_classes = w3.shape[1]
    h1_pad = _round_up(h1, 128)  # lane-dense intermediate (exact: zeros contribute 0)

    # fold fc2 @ pred_layer (no nonlinearity in between), in f32
    w23 = w2.astype(jnp.float32) @ w3.astype(jnp.float32)          # (H1, C)

    w1_p = jnp.zeros((input_size, h1_pad), jnp.float32).at[:, :h1].set(
        w1.astype(jnp.float32))
    b1_p = jnp.zeros((1, h1_pad), jnp.float32).at[:, :h1].set(
        b1.reshape(1, -1).astype(jnp.float32))
    w23_p = jnp.zeros((h1_pad, num_classes), jnp.float32).at[:h1, :].set(w23)
    b3_p = b3.reshape(1, -1).astype(jnp.float32)

    return (w1_p.astype(jnp.bfloat16), b1_p, w23_p.astype(jnp.bfloat16), b3_p,
            input_size, num_classes)


def _pick_tm(batch, bytes_per_row, tm_max):
    """Largest batch tile within a generation-safe VMEM budget; even step count."""
    rows = _round_up(max(batch, 1), 8)
    budget = 24 << 20  # double-buffered streaming budget (safe on v5e/v6e/v7x)
    cap = max(8, (min(tm_max, budget // max(bytes_per_row, 1)) // 8) * 8)
    if rows <= cap:
        if rows >= 1024:
            # split into 2 tiles so both v7x TensorCores get balanced work
            return _round_up(pl.cdiv(rows, 2), 8)
        return rows
    steps = pl.cdiv(rows, cap)
    if steps % 2:
        steps += 1  # even step count -> balanced across 2 TCs on v7x
    return max(8, _round_up(pl.cdiv(rows, steps), 8))


def mlp2_forward(x, prepared_params, *, tm_max=4096):
    """x: arbitrary shape whose trailing elements flatten to input_size per row."""
    w1_bf, b1_f, w23_bf, b3_f, input_size, num_classes = prepared_params
    h1_pad = w1_bf.shape[1]

    # == torch x.view(-1, input_size); metadata-only reshape, no dtype pass.
    x2d = x.reshape(-1, input_size)
    batch = x2d.shape[0]

    # Tile selection: big tiles to amortize per-step overhead, capped by VMEM.
    bytes_per_row = 2 * (input_size * x2d.dtype.itemsize + num_classes * 4)
    tm = _pick_tm(batch, bytes_per_row, tm_max)
    grid = (pl.cdiv(batch, tm),)   # ragged last block handled by Pallas masking

    # Explicit VMEM budget: double-buffered streams + resident weights + margin.
    stream_bytes = 2 * tm * (input_size * x2d.dtype.itemsize + num_classes * 4)
    weight_bytes = (w1_bf.size + w23_bf.size) * 2 + (b1_f.size + b3_f.size) * 4
    vmem_limit = int(min(max(2 * (stream_bytes + weight_bytes) + (4 << 20),
                             32 << 20), 48 << 20))

    out = pl.pallas_call(
        mlp2_kernel,
        out_shape=jax.ShapeDtypeStruct((batch, num_classes), jnp.float32),
        grid=grid,
        in_specs=[
            pl.BlockSpec((tm, input_size), lambda i: (i, 0)),            # x tile
            pl.BlockSpec((input_size, h1_pad), lambda i: (0, 0)),        # w1 resident
            pl.BlockSpec((1, h1_pad), lambda i: (0, 0)),                 # b1 resident
            pl.BlockSpec((h1_pad, num_classes), lambda i: (0, 0)),       # w23 resident
            pl.BlockSpec((1, num_classes), lambda i: (0, 0)),            # b3 resident
        ],
        # Unpadded output (full last dim): 12.8x less writeback than c_pad=128
        # and no wrapper lane-slice pass; kernel is DMA-bound, not vst-bound.
        out_specs=pl.BlockSpec((tm, num_classes), lambda i: (i, 0)),
        compiler_params=pltpu.CompilerParams(
            dimension_semantics=("parallel",),
            vmem_limit_bytes=vmem_limit),
    )(x2d, w1_bf, b1_f, w23_bf, b3_f)

    return out


def init_params(key, input_size, hidden_size_1, hidden_size_2, num_classes):
    """Deterministic init mimicking torch.nn.Linear default (uniform +/- 1/sqrt(fan_in))."""
    k = jax.random.split(key, 5)

    def uniform(kk, shape, fan_in):
        bound = 1.0 / jnp.sqrt(fan_in)
        return jax.random.uniform(kk, shape, jnp.float32, -bound, bound)

    w1 = uniform(k[0], (input_size, hidden_size_1), input_size)
    b1 = uniform(k[1], (hidden_size_1,), input_size)
    w2 = uniform(k[2], (hidden_size_1, hidden_size_2), hidden_size_1)
    w3 = uniform(k[3], (hidden_size_2, num_classes), hidden_size_2)
    b3 = uniform(k[4], (num_classes,), hidden_size_2)
    return w1, b1, w2, w3, b3


def _reference(x, w1, b1, w2, w3, b3, input_size):
    x2d = x.reshape(-1, input_size)
    return jnp.maximum(x2d @ w1 + b1, 0.0) @ w2 @ w3 + b3


if __name__ == "__main__":
    # x is NCHW (2, 4, 4, 4) -> flattened rows of size input_size = 4*4*4 = 64
    batch, C, H, W = 2, 4, 4, 4
    input_size = C * H * W           # 64
    hidden_size_1 = 32
    hidden_size_2 = 32
    num_classes = 10

    key = jax.random.PRNGKey(0)
    kx, kx2, kp = jax.random.split(key, 3)
    x = jax.random.normal(kx, (batch, C, H, W), jnp.float32)
    w1, b1, w2, w3, b3 = init_params(kp, input_size, hidden_size_1,
                                     hidden_size_2, num_classes)

    # Weight preprocessing done ONCE, outside the forward hot path.
    params = prepare_mlp2_params(w1, b1, w2, w3, b3)

    # --- small NCHW input (single ragged tile, rows < 8) -----------------------
    out = jax.block_until_ready(mlp2_forward(x, params))
    assert out.shape == (batch, num_classes)
    ref = _reference(x, w1, b1, w2, w3, b3, input_size)
    # bf16 matmul inputs (f32 accumulation) -> loosened tolerance vs f32 reference.
    assert jnp.allclose(out, ref, atol=3e-2, rtol=3e-2), \
        float(jnp.max(jnp.abs(out - ref)))

    # --- larger non-multiple-of-8 batch: 2-step grid + masked ragged last block,
    #     no wrapper padding / casting / slicing passes --------------------------
    x_big = jax.random.normal(kx2, (1037, input_size), jnp.float32)
    out_big = jax.block_until_ready(mlp2_forward(x_big, params))
    assert out_big.shape == (1037, num_classes)
    ref_big = _reference(x_big, w1, b1, w2, w3, b3, input_size)
    assert jnp.allclose(out_big, ref_big, atol=3e-2, rtol=3e-2), \
        float(jnp.max(jnp.abs(out_big - ref_big)))

    print("KERNEL_OK")
</pallas_src>

<mosaic_0001>
module attributes {stable_mosaic.version = 11 : i64} {
  func.func @mlp2_kernel(%arg0: i32, %arg1: memref<8x64xf32, #tpu.memory_space<vmem>>, %arg2: memref<64x128xbf16, #tpu.memory_space<vmem>>, %arg3: memref<1x128xf32, #tpu.memory_space<vmem>>, %arg4: memref<128x10xbf16, #tpu.memory_space<vmem>>, %arg5: memref<1x10xf32, #tpu.memory_space<vmem>>, %arg6: memref<8x10xf32, #tpu.memory_space<vmem>>) attributes {dimension_semantics = [#tpu.dimension_semantics<parallel>], iteration_bounds = array<i64: 1>, scalar_prefetch = 0 : i64, scratch_operands = 0 : i64, tpu.core_type = #tpu.core_type<tc>, window_params = [{transform_indices = @transform_0, window_bounds = array<i64: 8, 64>}, {pipeline_mode = #tpu.pipeline_mode<synchronous>, transform_indices = @transform_1, window_bounds = array<i64: 64, 128>}, {pipeline_mode = #tpu.pipeline_mode<synchronous>, transform_indices = @transform_2, window_bounds = array<i64: 1, 128>}, {pipeline_mode = #tpu.pipeline_mode<synchronous>, transform_indices = @transform_3, window_bounds = array<i64: 128, 10>}, {pipeline_mode = #tpu.pipeline_mode<synchronous>, transform_indices = @transform_4, window_bounds = array<i64: 1, 10>}, {transform_indices = @transform_5, window_bounds = array<i64: 8, 10>}]} {
    %c0 = arith.constant 0 : index
    %c0_0 = arith.constant 0 : index
    %0 = vector.load %arg1[%c0, %c0_0] : memref<8x64xf32, #tpu.memory_space<vmem>>, vector<8x64xf32>
    %1 = arith.truncf %0 : vector<8x64xf32> to vector<8x64xbf16>
    %c0_1 = arith.constant 0 : index
    %c0_2 = arith.constant 0 : index
    %2 = vector.load %arg2[%c0_1, %c0_2] : memref<64x128xbf16, #tpu.memory_space<vmem>>, vector<64x128xbf16>
    %cst = arith.constant dense<0.000000e+00> : vector<8x128xf32>
    %3 = tpu.matmul %1, %2, %cst {dimension_numbers = #tpu.dot_dimension_numbers<[1], [0], [0], [1], [0, 0, 1, 1], [], []>} : vector<8x64xbf16>, vector<64x128xbf16>, vector<8x128xf32> -> vector<8x128xf32>
    %c0_3 = arith.constant 0 : index
    %c0_4 = arith.constant 0 : index
    %4 = vector.load %arg3[%c0_3, %c0_4] : memref<1x128xf32, #tpu.memory_space<vmem>>, vector<1x128xf32>
    %5 = vector.broadcast %4 : vector<1x128xf32> to vector<8x128xf32>
    %6 = arith.addf %3, %5 : vector<8x128xf32>
    %cst_5 = arith.constant 0.000000e+00 : f32
    %7 = vector.broadcast %cst_5 : f32 to vector<8x128xf32>
    %8 = arith.maximumf %6, %7 : vector<8x128xf32>
    %9 = arith.truncf %8 : vector<8x128xf32> to vector<8x128xbf16>
    %c0_6 = arith.constant 0 : index
    %c0_7 = arith.constant 0 : index
    %10 = vector.load %arg4[%c0_6, %c0_7] : memref<128x10xbf16, #tpu.memory_space<vmem>>, vector<128x10xbf16>
    %cst_8 = arith.constant dense<0.000000e+00> : vector<8x10xf32>
    %11 = tpu.matmul %9, %10, %cst_8 {dimension_numbers = #tpu.dot_dimension_numbers<[1], [0], [0], [1], [0, 0, 1, 1], [], []>} : vector<8x128xbf16>, vector<128x10xbf16>, vector<8x10xf32> -> vector<8x10xf32>
    %c0_9 = arith.constant 0 : index
    %c0_10 = arith.constant 0 : index
    %12 = vector.load %arg5[%c0_9, %c0_10] : memref<1x10xf32, #tpu.memory_space<vmem>>, vector<1x10xf32>
    %13 = vector.broadcast %12 : vector<1x10xf32> to vector<8x10xf32>
    %14 = arith.addf %11, %13 : vector<8x10xf32>
    %c0_11 = arith.constant 0 : index
    %c0_12 = arith.constant 0 : index
    %15 = vector.load %arg6[%c0_11, %c0_12] : memref<8x10xf32, #tpu.memory_space<vmem>>, vector<8x10xf32>
    tpu.vector_store %arg6[%c0_11, %c0_12], %14 {strides = array<i32>} : memref<8x10xf32, #tpu.memory_space<vmem>>, vector<8x10xf32>,
    return
  }
  func.func @transform_0(%arg0: i32) -> (i32, i32) {
    %c0_i32 = arith.constant 0 : i32
    %c0_i32_0 = arith.constant 0 : i32
    return %arg0, %c0_i32 : i32, i32
  }
  func.func @transform_1(%arg0: i32) -> (i32, i32) {
    %c0_i32 = arith.constant 0 : i32
    %c0_i32_0 = arith.constant 0 : i32
    %c0_i32_1 = arith.constant 0 : i32
    return %c0_i32, %c0_i32_0 : i32, i32
  }
  func.func @transform_2(%arg0: i32) -> (i32, i32) {
    %c0_i32 = arith.constant 0 : i32
    %c0_i32_0 = arith.constant 0 : i32
    %c0_i32_1 = arith.constant 0 : i32
    return %c0_i32, %c0_i32_0 : i32, i32
  }
  func.func @transform_3(%arg0: i32) -> (i32, i32) {
    %c0_i32 = arith.constant 0 : i32
    %c0_i32_0 = arith.constant 0 : i32
    %c0_i32_1 = arith.constant 0 : i32
    return %c0_i32, %c0_i32_0 : i32, i32
  }
  func.func @transform_4(%arg0: i32) -> (i32, i32) {
    %c0_i32 = arith.constant 0 : i32
    %c0_i32_0 = arith.constant 0 : i32
    %c0_i32_1 = arith.constant 0 : i32
    return %c0_i32, %c0_i32_0 : i32, i32
  }
  func.func @transform_5(%arg0: i32) -> (i32, i32) {
    %c0_i32 = arith.constant 0 : i32
    %c0_i32_0 = arith.constant 0 : i32
    return %arg0, %c0_i32 : i32, i32
  }
}

</mosaic_0001>

<llo_original>
// kernel: tpu_custom_call.1
$region0: #{tpu_custom_call.1}
  #allocation0 [shape = 'u32[]', space=smem, size = 0x4, offset = 0x4, fixed_abs, tag = 'smem constant byte address 0x4 - core index']
  #allocation1 [shape = 'u32[144,128]{1,0:T(1,128)}', space=vmem, size = 0x12000, scoped, tag = 'internal scratch']
  %s0 = inlined_call_operand.vmem [shape: f32[2,64], index: 0, kind: input, shape index: {}]
  %s1 = inlined_call_operand.vmem [shape: bf16[64,128], index: 1, kind: input, shape index: {}]
  %s2 = inlined_call_operand.vmem [shape: f32[1,128], index: 2, kind: input, shape index: {}]
  %s3 = inlined_call_operand.vmem [shape: bf16[128,10], index: 3, kind: input, shape index: {}]
  %s4 = inlined_call_operand.vmem [shape: f32[1,10], index: 4, kind: input, shape index: {}]
  %s5 = inlined_call_operand.hbm [shape: f32[2,10], index: 5, kind: output, shape index: {}]
  %s6 = sld [smem:[#allocation0]]
  $region30: #{tpu_custom_call.1} parent=0
    _
  %s8 = ssub.s32 1, %s6
  %s9 = scalar_select 0, %s8, %s6
  $region1: #{tpu_custom_call.1} parent=0
    #allocation2 [shape = 'u8[4096]{0}', space=vmem, size = 0x1000, scoped, tag = 'output window, operand 0, single buffered']
    #allocation3 [shape = 's32[1]{0}', space=sflag, size = 0x4, scoped, tag = 'scoped memory for tpu_custom_call.1']
    %10 = vsyncpa [#allocation3], 0
    // Predicated region
    $region2: #{tpu_custom_call.1} parent=1 // pred_check
      _
    $region3: #{tpu_custom_call.1} parent=1 // pred_check_branch
      %12 = sbr.rel (0) target = $region5
    $region4: #{tpu_custom_call.1} parent=1 // pred_region
      _
    $region5: #{tpu_custom_call.1} parent=1 // pred_fallthru
      _
    // Predicated region
    $region6: #{tpu_custom_call.1} parent=1 // pred_check
      _
    $region7: #{tpu_custom_call.1} parent=1 // pred_check_branch
      %14 = sbr.rel (0) target = $region9
    $region8: #{tpu_custom_call.1} parent=1 // pred_region
      _
    $region9: #{tpu_custom_call.1} parent=1 // pred_fallthru
      _
    // Predicated region
    $region10: #{tpu_custom_call.1} parent=1 // pred_check
      _
    $region11: #{tpu_custom_call.1} parent=1 // pred_check_branch
      %16 = sbr.rel (0) target = $region13
    $region12: #{tpu_custom_call.1} parent=1 // pred_region
      _
    $region13: #{tpu_custom_call.1} parent=1 // pred_fallthru
      _
    // Predicated region
    $region14: #{tpu_custom_call.1} parent=1 // pred_check
      _
    $region15: #{tpu_custom_call.1} parent=1 // pred_check_branch
      %18 = sbr.rel (0) target = $region17
    $region16: #{tpu_custom_call.1} parent=1 // pred_region
      _
    $region17: #{tpu_custom_call.1} parent=1 // pred_fallthru
      _
    // Predicated region
    $region18: #{tpu_custom_call.1} parent=1 // pred_check
      _
    $region19: #{tpu_custom_call.1} parent=1 // pred_check_branch
      %20 = sbr.rel (0) target = $region21
    $region20: #{tpu_custom_call.1} parent=1 // pred_region
      _
    $region21: #{tpu_custom_call.1} parent=1 // pred_fallthru
      _
    %v22 = vld [vmem:[%s0] sm:$0xff]
    %v23 = vpack.c.bf16 %v22, %v22
    %v24 = vld [vmem:[%s1] sm:$0xf]
    %v25 = vld [vmem:[%s1 + $0x4] sm:$0xf]
    %v26 = vld [vmem:[%s1 + $0x8] sm:$0xf]
    %v27 = vld [vmem:[%s1 + $0xc] sm:$0xf]
    %v28 = vld [vmem:[%s1 + $0x10] sm:$0xf]
    %v29 = vld [vmem:[%s1 + $0x14] sm:$0xf]
    %v30 = vld [vmem:[%s1 + $0x18] sm:$0xf]
    %v31 = vld [vmem:[%s1 + $0x1c] sm:$0xf]
    %v32 = vld [vmem:[%s2] sm:$0x1]
    %v34 = vlaneseq
    %v35 = vshrl.u32 %v34, 7
    %v36 = vsub.s32 0, %v35
    %v37 = vrot.slane %v32, %v36
    %v47 = vunpack.c.l.b16 %v24
    %v48 = vunpack.c.l.b16 %v25
    %v49 = vunpack.c.l.b16 %v26
    %v50 = vunpack.c.l.b16 %v27
    %v51 = vunpack.c.l.b16 %v28
    %v52 = vunpack.c.l.b16 %v29
    %v53 = vunpack.c.l.b16 %v30
    %v54 = vunpack.c.l.b16 %v31
    %v55 = vpack.c.b16 %v48, %v47
    %v56 = vpack.c.b16 %v50, %v49
    %v57 = vpack.c.b16 %v52, %v51
    %v58 = vpack.c.b16 %v54, %v53
    %vm63 = vcmask 523264
    %v65 = vsel %vm63, %v23, 0
    %67 = vmatprep.subr.bf16.mxu0 0
    %68 = vmatpush1.bf16.msra.mxu0 %v55
    %69 = vmatprep.subr.bf16.mxu0 0
    %70 = vmatpush1.bf16.msra.mxu0 %v56
    %71 = vmatprep.subr.bf16.mxu0 0
    %72 = vmatpush1.bf16.msra.mxu0 %v57
    %73 = vmatprep.subr.bf16.mxu0 0
    %74 = vmatpush1.bf16.msra.mxu0 %v58
    %75 = vmatprep.subr.bf16.mxu0 0
    %76 = vmatpush1.bf16.msra.mxu0 0
    %77 = vmatprep.subr.bf16.mxu0 0
    %78 = vmatpush1.bf16.msra.mxu0 0
    %79 = vmatprep.subr.bf16.mxu0 0
    %80 = vmatpush1.bf16.msra.mxu0 0
    %81 = vmatprep.subr.bf16.mxu0 0
    %82 = vmatpush1.bf16.msra.mxu0 0
    %83 = vmatprep.subr.bf16.mxu0 0
    %84 = vmatpush1.bf16.msra.mxu0 0
    %85 = vmatprep.subr.bf16.mxu0 0
    %86 = vmatpush1.bf16.msra.mxu0 0
    %87 = vmatprep.subr.bf16.mxu0 0
    %88 = vmatpush1.bf16.msra.mxu0 0
    %89 = vmatprep.subr.bf16.mxu0 0
    %90 = vmatpush1.bf16.msra.mxu0 0
    %91 = vmatprep.subr.bf16.mxu0 0
    %92 = vmatpush1.bf16.msra.mxu0 0
    %93 = vmatprep.subr.bf16.mxu0 0
    %94 = vmatpush1.bf16.msra.mxu0 0
    %95 = vmatprep.subr.bf16.mxu0 0
    %96 = vmatpush1.bf16.msra.mxu0 0
    %97 = vmatprep.subr.bf16.mxu0 0
    %98 = vmatpush1.bf16.msra.mxu0 0
    %99 = vmatprep.mubr.bf16.mxu0 0
    %100 = vmatmul.mubr.bf16.gmra.mrb[0].mxu0 %v65
    %v101 = vpop.f32.mrb[0].mxu0
    %v102 = vadd.f32 %v37, %v101
    %v103 = vpop.f32.mrb[0].mxu0
    %v104 = vpop.f32.mrb[0].mxu0
    %v105 = vpop.f32.mrb[0].mxu0
    %106 = vdwg.mxu0
    %v107 = vmax.f32 %v102, 0.0
    %v108 = vpack.c.bf16 %v107, %v107
    %v109 = vld [vmem:[%s3] sm:$0xf]
    %v110 = vld [vmem:[%s3 + $0x4] sm:$0xf]
    %v111 = vld [vmem:[%s3 + $0x8] sm:$0xf]
    %v112 = vld [vmem:[%s3 + $0xc] sm:$0xf]
    %v113 = vld [vmem:[%s3 + $0x10] sm:$0xf]
    %v114 = vld [vmem:[%s3 + $0x14] sm:$0xf]
    %v115 = vld [vmem:[%s3 + $0x18] sm:$0xf]
    %v116 = vld [vmem:[%s3 + $0x1c] sm:$0xf]
    %v117 = vld [vmem:[%s3 + $0x20] sm:$0xf]
    %v118 = vld [vmem:[%s3 + $0x24] sm:$0xf]
    %v119 = vld [vmem:[%s3 + $0x28] sm:$0xf]
    %v120 = vld [vmem:[%s3 + $0x2c] sm:$0xf]
    %v121 = vld [vmem:[%s3 + $0x30] sm:$0xf]
    %v122 = vld [vmem:[%s3 + $0x34] sm:$0xf]
    %v123 = vld [vmem:[%s3 + $0x38] sm:$0xf]
    %v124 = vld [vmem:[%s3 + $0x3c] sm:$0xf]
    %v125 = vld [vmem:[%s4] sm:$0x1]
    %v127 = vlaneseq
    %v128 = vshrl.u32 %v127, 7
    %v129 = vsub.s32 0, %v128
    %v130 = vrot.slane %v125, %v129
    %v148 = vunpack.c.l.b16 %v109
    %v149 = vunpack.c.l.b16 %v110
    %v150 = vunpack.c.l.b16 %v111
    %v151 = vunpack.c.l.b16 %v112
    %v152 = vunpack.c.l.b16 %v113
    %v153 = vunpack.c.l.b16 %v114
    %v154 = vunpack.c.l.b16 %v115
    %v155 = vunpack.c.l.b16 %v116
    %v156 = vunpack.c.l.b16 %v117
    %v157 = vunpack.c.l.b16 %v118
    %v158 = vunpack.c.l.b16 %v119
    %v159 = vunpack.c.l.b16 %v120
    %v160 = vunpack.c.l.b16 %v121
    %v161 = vunpack.c.l.b16 %v122
    %v162 = vunpack.c.l.b16 %v123
    %v163 = vunpack.c.l.b16 %v124
    %v164 = vpack.c.b16 %v149, %v148
    %v165 = vpack.c.b16 %v151, %v150
    %v166 = vpack.c.b16 %v153, %v152
    %v167 = vpack.c.b16 %v155, %v154
    %v168 = vpack.c.b16 %v157, %v156
    %v169 = vpack.c.b16 %v159, %v158
    %v170 = vpack.c.b16 %v161, %v160
    %v171 = vpack.c.b16 %v163, %v162
    %180 = vmatprep.subr.bf16.mxu0 0
    %181 = vmatpush1.bf16.msra.mxu0 %v164
    %182 = vmatprep.subr.bf16.mxu0 0
    %183 = vmatpush1.bf16.msra.mxu0 %v165
    %184 = vmatprep.subr.bf16.mxu0 0
    %185 = vmatpush1.bf16.msra.mxu0 %v166
    %186 = vmatprep.subr.bf16.mxu0 0
    %187 = vmatpush1.bf16.msra.mxu0 %v167
    %188 = vmatprep.subr.bf16.mxu0 0
    %189 = vmatpush1.bf16.msra.mxu0 %v168
    %190 = vmatprep.subr.bf16.mxu0 0
    %191 = vmatpush1.bf16.msra.mxu0 %v169
    %192 = vmatprep.subr.bf16.mxu0 0
    %193 = vmatpush1.bf16.msra.mxu0 %v170
    %194 = vmatprep.subr.bf16.mxu0 0
    %195 = vmatpush1.bf16.msra.mxu0 %v171
    %196 = vmatprep.subr.bf16.mxu0 0
    %197 = vmatpush1.bf16.msra.mxu0 0
    %198 = vmatprep.subr.bf16.mxu0 0
    %199 = vmatpush1.bf16.msra.mxu0 0
    %200 = vmatprep.subr.bf16.mxu0 0
    %201 = vmatpush1.bf16.msra.mxu0 0
    %202 = vmatprep.subr.bf16.mxu0 0
    %203 = vmatpush1.bf16.msra.mxu0 0
    %204 = vmatprep.subr.bf16.mxu0 0
    %205 = vmatpush1.bf16.msra.mxu0 0
    %206 = vmatprep.subr.bf16.mxu0 0
    %207 = vmatpush1.bf16.msra.mxu0 0
    %208 = vmatprep.subr.bf16.mxu0 0
    %209 = vmatpush1.bf16.msra.mxu0 0
    %210 = vmatprep.subr.bf16.mxu0 0
    %211 = vmatpush1.bf16.msra.mxu0 0
    %212 = vmatprep.mubr.bf16.mxu0 0
    %213 = vmatmul.mubr.bf16.gmra.mrb[0].mxu0 %v108
    %v214 = vpop.f32.mrb[0].mxu0
    %v215 = vadd.f32 %v130, %v214
    %v216 = vpop.f32.mrb[0].mxu0
    %v217 = vpop.f32.mrb[0].mxu0
    %v218 = vpop.f32.mrb[0].mxu0
    %219 = vdwg.mxu0
    %vm220 = vcmask 80896
    %221 = vst.msk [vmem:[#allocation2] sm:$0xff] %vm220, %v215
    // Predicated region
    $region22: #{tpu_custom_call.1} parent=1 // pred_check
      _
    $region23: #{tpu_custom_call.1} parent=1 // pred_check_branch
      %223 = sbr.rel (0) target = $region25
    $region24: #{tpu_custom_call.1} parent=1 // pred_region
      %s225 = ssub.s32 128, 32
      %226 = vsyncadd [#allocation3], %s225
      %s227 = sshll.u32 [#allocation2], 4
      %s228 = int_to_ptr.vmem [resolvable:$true] %s227
      %233 = dma.vmem_to_hbm [thread:$0]  %s228, 32, %s5, [#allocation3], 32, 32, 2
    $region25: #{tpu_custom_call.1} parent=1 // pred_fallthru
      _
    // Predicated region
    $region26: #{tpu_custom_call.1} parent=1 // pred_check
      _
    $region27: #{tpu_custom_call.1} parent=1 // pred_check_branch
      %235 = sbr.rel (0) target = $region29
    $region28: #{tpu_custom_call.1} parent=1 // pred_region
      %236 = dma.done [#allocation3], 128
    $region29: #{tpu_custom_call.1} parent=1 // pred_fallthru
      _
    %237 = vsyncpa [#allocation3], 1

</llo_original>
